<compile_context>
chip_gen: v5e
topology: v5e:2x2
jax: 0.10.0
libtpu: 0.0.40
codegen_flags: <defaults>
</compile_context>

<pallas_src>
import jax
import jax.numpy as jnp
from jax.experimental import pallas as pl
from jax.experimental.pallas import tpu as pltpu


def _round_up(n, m):
    return ((n + m - 1) // m) * m


def _fused_complex_mix_kernel(f_ref, rb_ref, o_ref):
    """One fused real matmul implementing the complex channel mix.

    f_ref  : (tm, 2K) = [Re(Fv) | Im(Fv)]        float32
    rb_ref : (2K, 2N) = [[Rr, Ri], [-Ri, Rr]]    float32
    o_ref  : (tm, 2N) = [Re(Fv@R) | Im(Fv@R)]    float32
    """
    f = f_ref[...]
    rb = rb_ref[...]
    # Manual bf16x3 (hi/lo split): f32-accurate result from three single-pass
    # bf16 MXU dots, without Precision.HIGHEST's multi-pass emulation.
    f_hi = f.astype(jnp.bfloat16)
    f_lo = (f - f_hi.astype(jnp.float32)).astype(jnp.bfloat16)
    rb_hi = rb.astype(jnp.bfloat16)
    rb_lo = (rb - rb_hi.astype(jnp.float32)).astype(jnp.bfloat16)

    acc = jnp.dot(f_hi, rb_hi, preferred_element_type=jnp.float32)
    acc = acc + jnp.dot(f_lo, rb_hi, preferred_element_type=jnp.float32)
    acc = acc + jnp.dot(f_hi, rb_lo, preferred_element_type=jnp.float32)
    o_ref[...] = acc


def pallas_complex_mix(f2, rb, *, tm=4096):
    """(M, 2K) [Re|Im] rows times the (2K, 2N) block mixing matrix -> (M, 2N)."""
    M, K2 = f2.shape
    K2r, N2 = rb.shape
    assert K2 == K2r, (K2, K2r)

    # Large M tile amortizes the ~0.35us/step grid overhead; clamp to the
    # (8-rounded) problem size so small problems still satisfy the (8,128)
    # block rule ("equal to full dim" clause on the narrow last axes).
    tm = min(tm, _round_up(M, 8))
    m_pad = _round_up(M, tm)
    if m_pad != M:
        # Ragged edge: zero-pad rows (cheap vs. the surrounding FFT passes);
        # the padded rows are sliced off again below.
        f2 = jnp.pad(f2, ((0, m_pad - M), (0, 0)))
    grid_m = m_pad // tm

    out = pl.pallas_call(
        _fused_complex_mix_kernel,
        out_shape=jax.ShapeDtypeStruct((m_pad, N2), jnp.float32),
        grid_spec=pltpu.PrefetchScalarGridSpec(
            num_scalar_prefetch=0,
            grid=(grid_m,),
            in_specs=[
                pl.BlockSpec((tm, K2), lambda i: (i, 0)),
                # Constant block index: Pallas fetches the tiny mixing matrix once.
                pl.BlockSpec((K2, N2), lambda i: (0, 0)),
            ],
            out_specs=pl.BlockSpec((tm, N2), lambda i: (i, 0)),
        ),
        compiler_params=pltpu.CompilerParams(
            # Shards the M grid axis across TensorCores on v7x; no-op on v5e/v6e.
            dimension_semantics=("parallel",),
            # Narrow (lane-padded) blocks: a (tm, 8/12) f32 block occupies tm*512 B
            # in VMEM, so tm=4096 => ~8 MiB of double-buffered blocks plus compiler
            # scratch for the in-kernel temporaries.  48 MiB is safe on every
            # generation (v7x physical VMEM is 64 MiB per TC; v5e/v6e have 128 MiB).
            vmem_limit_bytes=48 * 1024 * 1024,
        ),
    )(f2, rb)

    return out[:M] if m_pad != M else out


def fourier_conv_forward(x, R, *, tm=4096):
    """JAX/Pallas equivalent of FourierConv.forward.

    x: (..., C_in) real float32, channels last (torch.matmul(Fv, R) contracts
       the last axis, so the module only type-checks with channels last).
    R: (C_in, C_out) complex64 parameter.
    returns: real array of shape x.shape (== torch.fft.irfftn(Fv @ R, x.size())).
    """
    Cin, Cout = R.shape
    assert x.shape[-1] == Cin

    # TODO(synk): no Pallas TPU FFT primitive; fftn/irfftn stay as XLA ops.
    Fv = jnp.fft.fftn(x)                                         # complex64, x.shape

    # Single fused concat: [Re | Im] along the channel axis -> one kernel input.
    f2 = jnp.concatenate([jnp.real(Fv), jnp.imag(Fv)], axis=-1).astype(jnp.float32)
    f2 = f2.reshape(-1, 2 * Cin)                                  # (M, 2K)

    # Block mixing matrix: [Fr|Fi] @ [[Rr,Ri],[-Ri,Rr]] = [Re(FR)|Im(FR)].
    rr = jnp.real(R).astype(jnp.float32)
    ri = jnp.imag(R).astype(jnp.float32)
    rb = jnp.concatenate(
        [jnp.concatenate([rr, ri], axis=1),
         jnp.concatenate([-ri, rr], axis=1)], axis=0)             # (2K, 2N)

    out2 = pallas_complex_mix(f2, rb, tm=tm)                      # (M, 2N)
    RFv = jax.lax.complex(out2[:, :Cout], out2[:, Cout:])
    RFv = RFv.reshape(x.shape[:-1] + (Cout,))

    # torch.fft.irfftn(RFv, x.size()): crop last-axis frequencies to the half
    # spectrum, invert over all axes, real output with x's shape.
    return jnp.fft.irfftn(RFv, s=x.shape)


if __name__ == "__main__":
    key = jax.random.PRNGKey(0)
    kx, kr_re, kr_im = jax.random.split(key, 3)

    # Small channels-last shapes consistent with the module.
    B, H, W, Cin, Cout = 2, 16, 16, 4, 6
    x = jax.random.uniform(kx, (B, H, W, Cin), dtype=jnp.float32)

    # R ~ torch.rand(in_channels, out_channels, dtype=torch.cfloat):
    # real and imaginary parts each uniform in [0, 1), deterministic seed.
    R = (jax.random.uniform(kr_re, (Cin, Cout), dtype=jnp.float32)
         + 1j * jax.random.uniform(kr_im, (Cin, Cout), dtype=jnp.float32)
         ).astype(jnp.complex64)

    fwd = jax.jit(fourier_conv_forward)
    out = jax.block_until_ready(fwd(x, R))

    # Pure-JAX reference of the same math (fftn -> complex matmul -> irfftn).
    ref = jnp.fft.irfftn(jnp.matmul(jnp.fft.fftn(x), R), s=x.shape)

    assert out.shape == x.shape, (out.shape, x.shape)
    max_err = float(jnp.max(jnp.abs(out - ref)))
    assert jnp.allclose(out, ref, rtol=1e-2, atol=1e-2), max_err

    print("KERNEL_OK")
</pallas_src>

<mosaic_0001>
module attributes {stable_mosaic.version = 11 : i64} {
  func.func @_fused_complex_mix_kernel(%arg0: i32, %arg1: memref<512x8xf32, #tpu.memory_space<vmem>>, %arg2: memref<8x12xf32, #tpu.memory_space<vmem>>, %arg3: memref<512x12xf32, #tpu.memory_space<vmem>>) attributes {dimension_semantics = [#tpu.dimension_semantics<parallel>], iteration_bounds = array<i64: 1>, scalar_prefetch = 0 : i64, scratch_operands = 0 : i64, tpu.core_type = #tpu.core_type<tc>, window_params = [{transform_indices = @transform_0, window_bounds = array<i64: 512, 8>}, {pipeline_mode = #tpu.pipeline_mode<synchronous>, transform_indices = @transform_1, window_bounds = array<i64: 8, 12>}, {transform_indices = @transform_2, window_bounds = array<i64: 512, 12>}]} {
    %c0 = arith.constant 0 : index
    %c0_0 = arith.constant 0 : index
    %0 = vector.load %arg1[%c0, %c0_0] : memref<512x8xf32, #tpu.memory_space<vmem>>, vector<512x8xf32>
    %c0_1 = arith.constant 0 : index
    %c0_2 = arith.constant 0 : index
    %1 = vector.load %arg2[%c0_1, %c0_2] : memref<8x12xf32, #tpu.memory_space<vmem>>, vector<8x12xf32>
    %2 = arith.truncf %0 : vector<512x8xf32> to vector<512x8xbf16>
    %3 = arith.extf %2 : vector<512x8xbf16> to vector<512x8xf32>
    %4 = arith.subf %0, %3 : vector<512x8xf32>
    %5 = arith.truncf %4 : vector<512x8xf32> to vector<512x8xbf16>
    %6 = arith.truncf %1 : vector<8x12xf32> to vector<8x12xbf16>
    %7 = arith.extf %6 : vector<8x12xbf16> to vector<8x12xf32>
    %8 = arith.subf %1, %7 : vector<8x12xf32>
    %9 = arith.truncf %8 : vector<8x12xf32> to vector<8x12xbf16>
    %cst = arith.constant dense<0.000000e+00> : vector<512x12xf32>
    %10 = tpu.matmul %2, %6, %cst {dimension_numbers = #tpu.dot_dimension_numbers<[1], [0], [0], [1], [0, 0, 1, 1], [], []>} : vector<512x8xbf16>, vector<8x12xbf16>, vector<512x12xf32> -> vector<512x12xf32>
    %cst_3 = arith.constant dense<0.000000e+00> : vector<512x12xf32>
    %11 = tpu.matmul %5, %6, %cst_3 {dimension_numbers = #tpu.dot_dimension_numbers<[1], [0], [0], [1], [0, 0, 1, 1], [], []>} : vector<512x8xbf16>, vector<8x12xbf16>, vector<512x12xf32> -> vector<512x12xf32>
    %12 = arith.addf %10, %11 : vector<512x12xf32>
    %cst_4 = arith.constant dense<0.000000e+00> : vector<512x12xf32>
    %13 = tpu.matmul %2, %9, %cst_4 {dimension_numbers = #tpu.dot_dimension_numbers<[1], [0], [0], [1], [0, 0, 1, 1], [], []>} : vector<512x8xbf16>, vector<8x12xbf16>, vector<512x12xf32> -> vector<512x12xf32>
    %14 = arith.addf %12, %13 : vector<512x12xf32>
    %c0_5 = arith.constant 0 : index
    %c0_6 = arith.constant 0 : index
    %15 = vector.load %arg3[%c0_5, %c0_6] : memref<512x12xf32, #tpu.memory_space<vmem>>, vector<512x12xf32>
    tpu.vector_store %arg3[%c0_5, %c0_6], %14 {strides = array<i32>} : memref<512x12xf32, #tpu.memory_space<vmem>>, vector<512x12xf32>,
    return
  }
  func.func @transform_0(%arg0: i32) -> (i32, i32) {
    %c0_i32 = arith.constant 0 : i32
    %c0_i32_0 = arith.constant 0 : i32
    return %arg0, %c0_i32 : i32, i32
  }
  func.func @transform_1(%arg0: i32) -> (i32, i32) {
    %c0_i32 = arith.constant 0 : i32
    %c0_i32_0 = arith.constant 0 : i32
    %c0_i32_1 = arith.constant 0 : i32
    return %c0_i32, %c0_i32_0 : i32, i32
  }
  func.func @transform_2(%arg0: i32) -> (i32, i32) {
    %c0_i32 = arith.constant 0 : i32
    %c0_i32_0 = arith.constant 0 : i32
    return %arg0, %c0_i32 : i32, i32
  }
}

</mosaic_0001>

<llo_original>
// kernel: custom-call.1
$region0: #{custom-call.1}
  %s0 = inlined_call_operand.hbm [shape: c64[4,6], index: 0, kind: input, shape index: {}]
  %s1 = inlined_call_operand.vmem [shape: f32[4,6], index: 1, kind: output, shape index: {}]
  %s2 = scalar_lea.hbm %s0, 4
  $region1: #{custom-call.1} parent=0
    #allocation0 [shape = 's32[1]{0}', space=sflag, size = 0x4, scoped, tag = 'scoped memory for custom-call.1']
    %3 = vsyncpa [#allocation0], 0
    %s5 = sshll.u32 %s2, 4
    %s6 = int_to_ptr.hbm [resolvable:$true] %s5
    %s7 = sshll.u32 %s1, 4
    %s8 = int_to_ptr.vmem [resolvable:$true] %s7
    %10 = dma.hbm_to_vmem [thread:$0]  %s6, 64, %s8, [#allocation0]
    %12 = dma.done [#allocation0], 64
    %13 = vsyncpa [#allocation0], 1

// kernel: custom-call
$region0: #{custom-call}
  %s0 = inlined_call_operand.hbm [shape: c64[4,6], index: 0, kind: input, shape index: {}]
  %s1 = inlined_call_operand.vmem [shape: f32[4,6], index: 1, kind: output, shape index: {}]
  $region1: #{custom-call} parent=0
    #allocation0 [shape = 's32[1]{0}', space=sflag, size = 0x4, scoped, tag = 'scoped memory for custom-call']
    %2 = vsyncpa [#allocation0], 0
    %s4 = sshll.u32 %s0, 4
    %s5 = int_to_ptr.hbm [resolvable:$true] %s4
    %s6 = sshll.u32 %s1, 4
    %s7 = int_to_ptr.vmem [resolvable:$true] %s6
    %9 = dma.hbm_to_vmem [thread:$0]  %s5, 64, %s7, [#allocation0]
    %11 = dma.done [#allocation0], 64
    %12 = vsyncpa [#allocation0], 1

// kernel: neg.1
$region0: #{neg.1}
  #allocation0 [shape = 's32[1]{0}', space=sflag, size = 0x4, scoped, tag = 'scoped memory for neg.1']
  %s0 = inlined_call_operand.vmem [shape: f32[4,6], index: 0, kind: input, shape index: {}]
  %s1 = inlined_call_operand.vmem [shape: f32[4,6], index: 1, kind: output, shape index: {}]
  %v2 = vld [vmem:[%s0] sm:$0xf]
  %3 = xla_tuple %v2
  %4 = xla_tuple %3
  %v5 = vxor.u32 %v2, 2147483648
  %6 = xla_tuple %v5
  %7 = vst [vmem:[%s1] sm:$0xf] %v5

// kernel: fourier_conv_forward.1
$region0: #{fourier_conv_forward.1}
  #allocation0 [shape = 'u32[]', space=smem, size = 0x4, offset = 0x4, fixed_abs, tag = 'smem constant byte address 0x4 - core index']
  #allocation1 [shape = 'u32[72,128]{1,0:T(1,128)}', space=vmem, size = 0x9000, scoped, tag = 'internal scratch']
  %s0 = inlined_call_operand.vmem [shape: f32[512,8], index: 0, kind: input, shape index: {}]
  %s1 = inlined_call_operand.vmem [shape: f32[8,12], index: 1, kind: input, shape index: {}]
  %s2 = inlined_call_operand.vmem [shape: f32[512,12], index: 2, kind: output, shape index: {}]
  %s3 = sld [smem:[#allocation0]]
  $region18: #{fourier_conv_forward.1} parent=0
    _
  %s5 = ssub.s32 1, %s3
  %s6 = scalar_select 0, %s5, %s3
  // Predicated region
  $region2: #{fourier_conv_forward.1} parent=0 // pred_check
    _
  $region3: #{fourier_conv_forward.1} parent=0 // pred_check_branch
    %8 = sbr.rel (0) target = $region5
  $region4: #{fourier_conv_forward.1} parent=0 // pred_region
    _
  $region5: #{fourier_conv_forward.1} parent=0 // pred_fallthru
    _
  // Predicated region
  $region6: #{fourier_conv_forward.1} parent=0 // pred_check
    _
  $region7: #{fourier_conv_forward.1} parent=0 // pred_check_branch
    %10 = sbr.rel (0) target = $region9
  $region8: #{fourier_conv_forward.1} parent=0 // pred_region
    _
  $region9: #{fourier_conv_forward.1} parent=0 // pred_fallthru
    _
  %v12 = vld [vmem:[%s0] sm:$0xff]
  %v13 = vld [vmem:[%s0 + $0x8] sm:$0xff]
  %v14 = vld [vmem:[%s0 + $0x10] sm:$0xff]
  %v15 = vld [vmem:[%s0 + $0x18] sm:$0xff]
  %v16 = vld [vmem:[%s0 + $0x20] sm:$0xff]
  %v17 = vld [vmem:[%s0 + $0x28] sm:$0xff]
  %v18 = vld [vmem:[%s0 + $0x30] sm:$0xff]
  %v19 = vld [vmem:[%s0 + $0x38] sm:$0xff]
  %v20 = vld [vmem:[%s0 + $0x40] sm:$0xff]
  %v21 = vld [vmem:[%s0 + $0x48] sm:$0xff]
  %v22 = vld [vmem:[%s0 + $0x50] sm:$0xff]
  %v23 = vld [vmem:[%s0 + $0x58] sm:$0xff]
  %v24 = vld [vmem:[%s0 + $0x60] sm:$0xff]
  %v25 = vld [vmem:[%s0 + $0x68] sm:$0xff]
  %v26 = vld [vmem:[%s0 + $0x70] sm:$0xff]
  %v27 = vld [vmem:[%s0 + $0x78] sm:$0xff]
  %v28 = vld [vmem:[%s0 + $0x80] sm:$0xff]
  %v29 = vld [vmem:[%s0 + $0x88] sm:$0xff]
  %v30 = vld [vmem:[%s0 + $0x90] sm:$0xff]
  %v31 = vld [vmem:[%s0 + $0x98] sm:$0xff]
  %v32 = vld [vmem:[%s0 + $0xa0] sm:$0xff]
  %v33 = vld [vmem:[%s0 + $0xa8] sm:$0xff]
  %v34 = vld [vmem:[%s0 + $0xb0] sm:$0xff]
  %v35 = vld [vmem:[%s0 + $0xb8] sm:$0xff]
  %v36 = vld [vmem:[%s0 + $0xc0] sm:$0xff]
  %v37 = vld [vmem:[%s0 + $0xc8] sm:$0xff]
  %v38 = vld [vmem:[%s0 + $0xd0] sm:$0xff]
  %v39 = vld [vmem:[%s0 + $0xd8] sm:$0xff]
  %v40 = vld [vmem:[%s0 + $0xe0] sm:$0xff]
  %v41 = vld [vmem:[%s0 + $0xe8] sm:$0xff]
  %v42 = vld [vmem:[%s0 + $0xf0] sm:$0xff]
  %v43 = vld [vmem:[%s0 + $0xf8] sm:$0xff]
  %v44 = vld [vmem:[%s0 + $0x100] sm:$0xff]
  %v45 = vld [vmem:[%s0 + $0x108] sm:$0xff]
  %v46 = vld [vmem:[%s0 + $0x110] sm:$0xff]
  %v47 = vld [vmem:[%s0 + $0x118] sm:$0xff]
  %v48 = vld [vmem:[%s0 + $0x120] sm:$0xff]
  %v49 = vld [vmem:[%s0 + $0x128] sm:$0xff]
  %v50 = vld [vmem:[%s0 + $0x130] sm:$0xff]
  %v51 = vld [vmem:[%s0 + $0x138] sm:$0xff]
  %v52 = vld [vmem:[%s0 + $0x140] sm:$0xff]
  %v53 = vld [vmem:[%s0 + $0x148] sm:$0xff]
  %v54 = vld [vmem:[%s0 + $0x150] sm:$0xff]
  %v55 = vld [vmem:[%s0 + $0x158] sm:$0xff]
  %v56 = vld [vmem:[%s0 + $0x160] sm:$0xff]
  %v57 = vld [vmem:[%s0 + $0x168] sm:$0xff]
  %v58 = vld [vmem:[%s0 + $0x170] sm:$0xff]
  %v59 = vld [vmem:[%s0 + $0x178] sm:$0xff]
  %v60 = vld [vmem:[%s0 + $0x180] sm:$0xff]
  %v61 = vld [vmem:[%s0 + $0x188] sm:$0xff]
  %v62 = vld [vmem:[%s0 + $0x190] sm:$0xff]
  %v63 = vld [vmem:[%s0 + $0x198] sm:$0xff]
  %v64 = vld [vmem:[%s0 + $0x1a0] sm:$0xff]
  %v65 = vld [vmem:[%s0 + $0x1a8] sm:$0xff]
  %v66 = vld [vmem:[%s0 + $0x1b0] sm:$0xff]
  %v67 = vld [vmem:[%s0 + $0x1b8] sm:$0xff]
  %v68 = vld [vmem:[%s0 + $0x1c0] sm:$0xff]
  %v69 = vld [vmem:[%s0 + $0x1c8] sm:$0xff]
  %v70 = vld [vmem:[%s0 + $0x1d0] sm:$0xff]
  %v71 = vld [vmem:[%s0 + $0x1d8] sm:$0xff]
  %v72 = vld [vmem:[%s0 + $0x1e0] sm:$0xff]
  %v73 = vld [vmem:[%s0 + $0x1e8] sm:$0xff]
  %v74 = vld [vmem:[%s0 + $0x1f0] sm:$0xff]
  %v75 = vld [vmem:[%s0 + $0x1f8] sm:$0xff]
  %v76 = vld [vmem:[%s1] sm:$0xff]
  %v77 = vpack.c.bf16 %v12, %v12
  %v78 = vpack.c.bf16 %v13, %v13
  %v79 = vpack.c.bf16 %v14, %v14
  %v80 = vpack.c.bf16 %v15, %v15
  %v81 = vpack.c.bf16 %v16, %v16
  %v82 = vpack.c.bf16 %v17, %v17
  %v83 = vpack.c.bf16 %v18, %v18
  %v84 = vpack.c.bf16 %v19, %v19
  %v85 = vpack.c.bf16 %v20, %v20
  %v86 = vpack.c.bf16 %v21, %v21
  %v87 = vpack.c.bf16 %v22, %v22
  %v88 = vpack.c.bf16 %v23, %v23
  %v89 = vpack.c.bf16 %v24, %v24
  %v90 = vpack.c.bf16 %v25, %v25
  %v91 = vpack.c.bf16 %v26, %v26
  %v92 = vpack.c.bf16 %v27, %v27
  %v93 = vpack.c.bf16 %v28, %v28
  %v94 = vpack.c.bf16 %v29, %v29
  %v95 = vpack.c.bf16 %v30, %v30
  %v96 = vpack.c.bf16 %v31, %v31
  %v97 = vpack.c.bf16 %v32, %v32
  %v98 = vpack.c.bf16 %v33, %v33
  %v99 = vpack.c.bf16 %v34, %v34
  %v100 = vpack.c.bf16 %v35, %v35
  %v101 = vpack.c.bf16 %v36, %v36
  %v102 = vpack.c.bf16 %v37, %v37
  %v103 = vpack.c.bf16 %v38, %v38
  %v104 = vpack.c.bf16 %v39, %v39
  %v105 = vpack.c.bf16 %v40, %v40
  %v106 = vpack.c.bf16 %v41, %v41
  %v107 = vpack.c.bf16 %v42, %v42
  %v108 = vpack.c.bf16 %v43, %v43
  %v109 = vpack.c.bf16 %v44, %v44
  %v110 = vpack.c.bf16 %v45, %v45
  %v111 = vpack.c.bf16 %v46, %v46
  %v112 = vpack.c.bf16 %v47, %v47
  %v113 = vpack.c.bf16 %v48, %v48
  %v114 = vpack.c.bf16 %v49, %v49
  %v115 = vpack.c.bf16 %v50, %v50
  %v116 = vpack.c.bf16 %v51, %v51
  %v117 = vpack.c.bf16 %v52, %v52
  %v118 = vpack.c.bf16 %v53, %v53
  %v119 = vpack.c.bf16 %v54, %v54
  %v120 = vpack.c.bf16 %v55, %v55
  %v121 = vpack.c.bf16 %v56, %v56
  %v122 = vpack.c.bf16 %v57, %v57
  %v123 = vpack.c.bf16 %v58, %v58
  %v124 = vpack.c.bf16 %v59, %v59
  %v125 = vpack.c.bf16 %v60, %v60
  %v126 = vpack.c.bf16 %v61, %v61
  %v127 = vpack.c.bf16 %v62, %v62
  %v128 = vpack.c.bf16 %v63, %v63
  %v129 = vpack.c.bf16 %v64, %v64
  %v130 = vpack.c.bf16 %v65, %v65
  %v131 = vpack.c.bf16 %v66, %v66
  %v132 = vpack.c.bf16 %v67, %v67
  %v133 = vpack.c.bf16 %v68, %v68
  %v134 = vpack.c.bf16 %v69, %v69
  %v135 = vpack.c.bf16 %v70, %v70
  %v136 = vpack.c.bf16 %v71, %v71
  %v137 = vpack.c.bf16 %v72, %v72
  %v138 = vpack.c.bf16 %v73, %v73
  %v139 = vpack.c.bf16 %v74, %v74
  %v140 = vpack.c.bf16 %v75, %v75
  %v141 = vunpack.c.l.bf16 %v77
  %v142 = vunpack.c.l.bf16 %v78
  %v143 = vunpack.c.l.bf16 %v79
  %v144 = vunpack.c.l.bf16 %v80
  %v145 = vunpack.c.l.bf16 %v81
  %v146 = vunpack.c.l.bf16 %v82
  %v147 = vunpack.c.l.bf16 %v83
  %v148 = vunpack.c.l.bf16 %v84
  %v149 = vunpack.c.l.bf16 %v85
  %v150 = vunpack.c.l.bf16 %v86
  %v151 = vunpack.c.l.bf16 %v87
  %v152 = vunpack.c.l.bf16 %v88
  %v153 = vunpack.c.l.bf16 %v89
  %v154 = vunpack.c.l.bf16 %v90
  %v155 = vunpack.c.l.bf16 %v91
  %v156 = vunpack.c.l.bf16 %v92
  %v157 = vunpack.c.l.bf16 %v93
  %v158 = vunpack.c.l.bf16 %v94
  %v159 = vunpack.c.l.bf16 %v95
  %v160 = vunpack.c.l.bf16 %v96
  %v161 = vunpack.c.l.bf16 %v97
  %v162 = vunpack.c.l.bf16 %v98
  %v163 = vunpack.c.l.bf16 %v99
  %v164 = vunpack.c.l.bf16 %v100
  %v165 = vunpack.c.l.bf16 %v101
  %v166 = vunpack.c.l.bf16 %v102
  %v167 = vunpack.c.l.bf16 %v103
  %v168 = vunpack.c.l.bf16 %v104
  %v169 = vunpack.c.l.bf16 %v105
  %v170 = vunpack.c.l.bf16 %v106
  %v171 = vunpack.c.l.bf16 %v107
  %v172 = vunpack.c.l.bf16 %v108
  %v173 = vunpack.c.l.bf16 %v109
  %v174 = vunpack.c.l.bf16 %v110
  %v175 = vunpack.c.l.bf16 %v111
  %v176 = vunpack.c.l.bf16 %v112
  %v177 = vunpack.c.l.bf16 %v113
  %v178 = vunpack.c.l.bf16 %v114
  %v179 = vunpack.c.l.bf16 %v115
  %v180 = vunpack.c.l.bf16 %v116
  %v181 = vunpack.c.l.bf16 %v117
  %v182 = vunpack.c.l.bf16 %v118
  %v183 = vunpack.c.l.bf16 %v119
  %v184 = vunpack.c.l.bf16 %v120
  %v185 = vunpack.c.l.bf16 %v121
  %v186 = vunpack.c.l.bf16 %v122
  %v187 = vunpack.c.l.bf16 %v123
  %v188 = vunpack.c.l.bf16 %v124
  %v189 = vunpack.c.l.bf16 %v125
  %v190 = vunpack.c.l.bf16 %v126
  %v191 = vunpack.c.l.bf16 %v127
  %v192 = vunpack.c.l.bf16 %v128
  %v193 = vunpack.c.l.bf16 %v129
  %v194 = vunpack.c.l.bf16 %v130
  %v195 = vunpack.c.l.bf16 %v131
  %v196 = vunpack.c.l.bf16 %v132
  %v197 = vunpack.c.l.bf16 %v133
  %v198 = vunpack.c.l.bf16 %v134
  %v199 = vunpack.c.l.bf16 %v135
  %v200 = vunpack.c.l.bf16 %v136
  %v201 = vunpack.c.l.bf16 %v137
  %v202 = vunpack.c.l.bf16 %v138
  %v203 = vunpack.c.l.bf16 %v139
  %v204 = vunpack.c.l.bf16 %v140
  %v205 = vsub.f32 %v12, %v141
  %v206 = vsub.f32 %v13, %v142
  %v207 = vsub.f32 %v14, %v143
  %v208 = vsub.f32 %v15, %v144
  %v209 = vsub.f32 %v16, %v145
  %v210 = vsub.f32 %v17, %v146
  %v211 = vsub.f32 %v18, %v147
  %v212 = vsub.f32 %v19, %v148
  %v213 = vsub.f32 %v20, %v149
  %v214 = vsub.f32 %v21, %v150
  %v215 = vsub.f32 %v22, %v151
  %v216 = vsub.f32 %v23, %v152
  %v217 = vsub.f32 %v24, %v153
  %v218 = vsub.f32 %v25, %v154
  %v219 = vsub.f32 %v26, %v155
  %v220 = vsub.f32 %v27, %v156
  %v221 = vsub.f32 %v28, %v157
  %v222 = vsub.f32 %v29, %v158
  %v223 = vsub.f32 %v30, %v159
  %v224 = vsub.f32 %v31, %v160
  %v225 = vsub.f32 %v32, %v161
  %v226 = vsub.f32 %v33, %v162
  %v227 = vsub.f32 %v34, %v163
  %v228 = vsub.f32 %v35, %v164
  %v229 = vsub.f32 %v36, %v165
  %v230 = vsub.f32 %v37, %v166
  %v231 = vsub.f32 %v38, %v167
  %v232 = vsub.f32 %v39, %v168
  %v233 = vsub.f32 %v40, %v169
  %v234 = vsub.f32 %v41, %v170
  %v235 = vsub.f32 %v42, %v171
  %v236 = vsub.f32 %v43, %v172
  %v237 = vsub.f32 %v44, %v173
  %v238 = vsub.f32 %v45, %v174
  %v239 = vsub.f32 %v46, %v175
  %v240 = vsub.f32 %v47, %v176
  %v241 = vsub.f32 %v48, %v177
  %v242 = vsub.f32 %v49, %v178
  %v243 = vsub.f32 %v50, %v179
  %v244 = vsub.f32 %v51, %v180
  %v245 = vsub.f32 %v52, %v181
  %v246 = vsub.f32 %v53, %v182
  %v247 = vsub.f32 %v54, %v183
  %v248 = vsub.f32 %v55, %v184
  %v249 = vsub.f32 %v56, %v185
  %v250 = vsub.f32 %v57, %v186
  %v251 = vsub.f32 %v58, %v187
  %v252 = vsub.f32 %v59, %v188
  %v253 = vsub.f32 %v60, %v189
  %v254 = vsub.f32 %v61, %v190
  %v255 = vsub.f32 %v62, %v191
  %v256 = vsub.f32 %v63, %v192
  %v257 = vsub.f32 %v64, %v193
  %v258 = vsub.f32 %v65, %v194
  %v259 = vsub.f32 %v66, %v195
  %v260 = vsub.f32 %v67, %v196
  %v261 = vsub.f32 %v68, %v197
  %v262 = vsub.f32 %v69, %v198
  %v263 = vsub.f32 %v70, %v199
  %v264 = vsub.f32 %v71, %v200
  %v265 = vsub.f32 %v72, %v201
  %v266 = vsub.f32 %v73, %v202
  %v267 = vsub.f32 %v74, %v203
  %v268 = vsub.f32 %v75, %v204
  %v269 = vpack.c.bf16 %v206, %v205
  %v270 = vpack.c.bf16 %v208, %v207
  %v271 = vpack.c.bf16 %v210, %v209
  %v272 = vpack.c.bf16 %v212, %v211
  %v273 = vpack.c.bf16 %v214, %v213
  %v274 = vpack.c.bf16 %v216, %v215
  %v275 = vpack.c.bf16 %v218, %v217
  %v276 = vpack.c.bf16 %v220, %v219
  %v277 = vpack.c.bf16 %v222, %v221
  %v278 = vpack.c.bf16 %v224, %v223
  %v279 = vpack.c.bf16 %v226, %v225
  %v280 = vpack.c.bf16 %v228, %v227
  %v281 = vpack.c.bf16 %v230, %v229
  %v282 = vpack.c.bf16 %v232, %v231
  %v283 = vpack.c.bf16 %v234, %v233
  %v284 = vpack.c.bf16 %v236, %v235
  %v285 = vpack.c.bf16 %v238, %v237
  %v286 = vpack.c.bf16 %v240, %v239
  %v287 = vpack.c.bf16 %v242, %v241
  %v288 = vpack.c.bf16 %v244, %v243
  %v289 = vpack.c.bf16 %v246, %v245
  %v290 = vpack.c.bf16 %v248, %v247
  %v291 = vpack.c.bf16 %v250, %v249
  %v292 = vpack.c.bf16 %v252, %v251
  %v293 = vpack.c.bf16 %v254, %v253
  %v294 = vpack.c.bf16 %v256, %v255
  %v295 = vpack.c.bf16 %v258, %v257
  %v296 = vpack.c.bf16 %v260, %v259
  %v297 = vpack.c.bf16 %v262, %v261
  %v298 = vpack.c.bf16 %v264, %v263
  %v299 = vpack.c.bf16 %v266, %v265
  %v300 = vpack.c.bf16 %v268, %v267
  %v301 = vpack.c.bf16 %v76, %v76
  %v302 = vunpack.c.l.bf16 %v301
  %v303 = vsub.f32 %v76, %v302
  %v304 = vpack.c.bf16 %v303, %v303
  %vm305 = vcmask 64512
  %v307 = vsel %vm305, %v269, 0
  %v310 = vsel %vm305, %v270, 0
  %v313 = vsel %vm305, %v271, 0
  %v316 = vsel %vm305, %v272, 0
  %v319 = vsel %vm305, %v273, 0
  %v322 = vsel %vm305, %v274, 0
  %v325 = vsel %vm305, %v275, 0
  %v328 = vsel %vm305, %v276, 0
  %v331 = vsel %vm305, %v277, 0
  %v334 = vsel %vm305, %v278, 0
  %v337 = vsel %vm305, %v279, 0
  %v340 = vsel %vm305, %v280, 0
  %v343 = vsel %vm305, %v281, 0
  %v346 = vsel %vm305, %v282, 0
  %v349 = vsel %vm305, %v283, 0
  %v352 = vsel %vm305, %v284, 0
  %v355 = vsel %vm305, %v285, 0
  %v358 = vsel %vm305, %v286, 0
  %v361 = vsel %vm305, %v287, 0
  %v364 = vsel %vm305, %v288, 0
  %v367 = vsel %vm305, %v289, 0
  %v370 = vsel %vm305, %v290, 0
  %v373 = vsel %vm305, %v291, 0
  %v376 = vsel %vm305, %v292, 0
  %v379 = vsel %vm305, %v293, 0
  %v382 = vsel %vm305, %v294, 0
  %v385 = vsel %vm305, %v295, 0
  %v388 = vsel %vm305, %v296, 0
  %v391 = vsel %vm305, %v297, 0
  %v394 = vsel %vm305, %v298, 0
  %v397 = vsel %vm305, %v299, 0
  %v400 = vsel %vm305, %v300, 0
  %vm402 = vcmask 1043456
  %v404 = vsel %vm402, %v301, 0
  %406 = vmatpush.bf16.msra.mxu0 0
  %407 = vmatpush.bf16.msra.mxu0 0
  %408 = vmatpush.bf16.msra.mxu0 0
  %409 = vmatpush.bf16.msra.mxu0 0
  %410 = vmatpush.bf16.msra.mxu0 0
  %411 = vmatpush.bf16.msra.mxu0 0
  %412 = vmatpush.bf16.msra.mxu0 0
  %413 = vmatpush.bf16.msra.mxu0 %v404
  %414 = vmatmul.bf16.gmra.mxu0 %v307
  %v415 = vpop.f32.mrf.mxu0
  %v416 = vadd.f32 0.0, %v415
  %v417 = vpop.f32.mrf.mxu0
  %v418 = vadd.f32 0.0, %v417
  %419 = vmatmul.bf16.gmra.mxu0 %v310
  %v420 = vpop.f32.mrf.mxu0
  %v421 = vadd.f32 0.0, %v420
  %v422 = vpop.f32.mrf.mxu0
  %v423 = vadd.f32 0.0, %v422
  %424 = vmatmul.bf16.gmra.mxu0 %v313
  %v425 = vpop.f32.mrf.mxu0
  %v426 = vadd.f32 0.0, %v425
  %v427 = vpop.f32.mrf.mxu0
  %v428 = vadd.f32 0.0, %v427
  %429 = vmatmul.bf16.gmra.mxu0 %v316
  %v430 = vpop.f32.mrf.mxu0
  %v431 = vadd.f32 0.0, %v430
  %v432 = vpop.f32.mrf.mxu0
  %v433 = vadd.f32 0.0, %v432
  %434 = vmatmul.bf16.gmra.mxu0 %v319
  %v435 = vpop.f32.mrf.mxu0
  %v436 = vadd.f32 0.0, %v435
  %v437 = vpop.f32.mrf.mxu0
  %v438 = vadd.f32 0.0, %v437
  %439 = vmatmul.bf16.gmra.mxu0 %v322
  %v440 = vpop.f32.mrf.mxu0
  %v441 = vadd.f32 0.0, %v440
  %v442 = vpop.f32.mrf.mxu0
  %v443 = vadd.f32 0.0, %v442
  %444 = vmatmul.bf16.gmra.mxu0 %v325
  %v445 = vpop.f32.mrf.mxu0
  %v446 = vadd.f32 0.0, %v445
  %v447 = vpop.f32.mrf.mxu0
  %v448 = vadd.f32 0.0, %v447
  %449 = vmatmul.bf16.gmra.mxu0 %v328
  %v450 = vpop.f32.mrf.mxu0
  %v451 = vadd.f32 0.0, %v450
  %v452 = vpop.f32.mrf.mxu0
  %v453 = vadd.f32 0.0, %v452
  %454 = vmatmul.bf16.gmra.mxu0 %v331
  %v455 = vpop.f32.mrf.mxu0
  %v456 = vadd.f32 0.0, %v455
  %v457 = vpop.f32.mrf.mxu0
  %v458 = vadd.f32 0.0, %v457
  %459 = vmatmul.bf16.gmra.mxu0 %v334
  %v460 = vpop.f32.mrf.mxu0
  %v461 = vadd.f32 0.0, %v460
  %v462 = vpop.f32.mrf.mxu0
  %v463 = vadd.f32 0.0, %v462
  %464 = vmatmul.bf16.gmra.mxu0 %v337
  %v465 = vpop.f32.mrf.mxu0
  %v466 = vadd.f32 0.0, %v465
  %v467 = vpop.f32.mrf.mxu0
  %v468 = vadd.f32 0.0, %v467
  %469 = vmatmul.bf16.gmra.mxu0 %v340
  %v470 = vpop.f32.mrf.mxu0
  %v471 = vadd.f32 0.0, %v470
  %v472 = vpop.f32.mrf.mxu0
  %v473 = vadd.f32 0.0, %v472
  %474 = vmatmul.bf16.gmra.mxu0 %v343
  %v475 = vpop.f32.mrf.mxu0
  %v476 = vadd.f32 0.0, %v475
  %v477 = vpop.f32.mrf.mxu0
  %v478 = vadd.f32 0.0, %v477
  %479 = vmatmul.bf16.gmra.mxu0 %v346
  %v480 = vpop.f32.mrf.mxu0
  %v481 = vadd.f32 0.0, %v480
  %v482 = vpop.f32.mrf.mxu0
  %v483 = vadd.f32 0.0, %v482
  %484 = vmatmul.bf16.gmra.mxu0 %v349
  %v485 = vpop.f32.mrf.mxu0
  %v486 = vadd.f32 0.0, %v485
  %v487 = vpop.f32.mrf.mxu0
  %v488 = vadd.f32 0.0, %v487
  %489 = vmatmul.bf16.gmra.mxu0 %v352
  %v490 = vpop.f32.mrf.mxu0
  %v491 = vadd.f32 0.0, %v490
  %v492 = vpop.f32.mrf.mxu0
  %v493 = vadd.f32 0.0, %v492
  %494 = vmatmul.bf16.gmra.mxu0 %v355
  %v495 = vpop.f32.mrf.mxu0
  %v496 = vadd.f32 0.0, %v495
  %v497 = vpop.f32.mrf.mxu0
  %v498 = vadd.f32 0.0, %v497
  %499 = vmatmul.bf16.gmra.mxu0 %v358
  %v500 = vpop.f32.mrf.mxu0
  %v501 = vadd.f32 0.0, %v500
  %v502 = vpop.f32.mrf.mxu0
  %v503 = vadd.f32 0.0, %v502
  %504 = vmatmul.bf16.gmra.mxu0 %v361
  %v505 = vpop.f32.mrf.mxu0
  %v506 = vadd.f32 0.0, %v505
  %v507 = vpop.f32.mrf.mxu0
  %v508 = vadd.f32 0.0, %v507
  %509 = vmatmul.bf16.gmra.mxu0 %v364
  %v510 = vpop.f32.mrf.mxu0
  %v511 = vadd.f32 0.0, %v510
  %v512 = vpop.f32.mrf.mxu0
  %v513 = vadd.f32 0.0, %v512
  %514 = vmatmul.bf16.gmra.mxu0 %v367
  %v515 = vpop.f32.mrf.mxu0
  %v516 = vadd.f32 0.0, %v515
  %v517 = vpop.f32.mrf.mxu0
  %v518 = vadd.f32 0.0, %v517
  %519 = vmatmul.bf16.gmra.mxu0 %v370
  %v520 = vpop.f32.mrf.mxu0
  %v521 = vadd.f32 0.0, %v520
  %v522 = vpop.f32.mrf.mxu0
  %v523 = vadd.f32 0.0, %v522
  %524 = vmatmul.bf16.gmra.mxu0 %v373
  %v525 = vpop.f32.mrf.mxu0
  %v526 = vadd.f32 0.0, %v525
  %v527 = vpop.f32.mrf.mxu0
  %v528 = vadd.f32 0.0, %v527
  %529 = vmatmul.bf16.gmra.mxu0 %v376
  %v530 = vpop.f32.mrf.mxu0
  %v531 = vadd.f32 0.0, %v530
  %v532 = vpop.f32.mrf.mxu0
  %v533 = vadd.f32 0.0, %v532
  %534 = vmatmul.bf16.gmra.mxu0 %v379
  %v535 = vpop.f32.mrf.mxu0
  %v536 = vadd.f32 0.0, %v535
  %v537 = vpop.f32.mrf.mxu0
  %v538 = vadd.f32 0.0, %v537
  %539 = vmatmul.bf16.gmra.mxu0 %v382
  %v540 = vpop.f32.mrf.mxu0
  %v541 = vadd.f32 0.0, %v540
  %v542 = vpop.f32.mrf.mxu0
  %v543 = vadd.f32 0.0, %v542
  %544 = vmatmul.bf16.gmra.mxu0 %v385
  %v545 = vpop.f32.mrf.mxu0
  %v546 = vadd.f32 0.0, %v545
  %v547 = vpop.f32.mrf.mxu0
  %v548 = vadd.f32 0.0, %v547
  %549 = vmatmul.bf16.gmra.mxu0 %v388
  %v550 = vpop.f32.mrf.mxu0
  %v551 = vadd.f32 0.0, %v550
  %v552 = vpop.f32.mrf.mxu0
  %v553 = vadd.f32 0.0, %v552
  %554 = vmatmul.bf16.gmra.mxu0 %v391
  %v555 = vpop.f32.mrf.mxu0
  %v556 = vadd.f32 0.0, %v555
  %v557 = vpop.f32.mrf.mxu0
  %v558 = vadd.f32 0.0, %v557
  %559 = vmatmul.bf16.gmra.mxu0 %v394
  %v560 = vpop.f32.mrf.mxu0
  %v561 = vadd.f32 0.0, %v560
  %v562 = vpop.f32.mrf.mxu0
  %v563 = vadd.f32 0.0, %v562
  %564 = vmatmul.bf16.gmra.mxu0 %v397
  %v565 = vpop.f32.mrf.mxu0
  %v566 = vadd.f32 0.0, %v565
  %v567 = vpop.f32.mrf.mxu0
  %v568 = vadd.f32 0.0, %v567
  %569 = vmatmul.bf16.gmra.mxu0 %v400
  %v570 = vpop.f32.mrf.mxu0
  %v571 = vadd.f32 0.0, %v570
  %v572 = vpop.f32.mrf.mxu0
  %v573 = vadd.f32 0.0, %v572
  %574 = vdwg.mxu0
  %v639 = vunpack.c.l.b16 %v77
  %v640 = vunpack.c.l.b16 %v78
  %v641 = vunpack.c.l.b16 %v79
  %v642 = vunpack.c.l.b16 %v80
  %v643 = vunpack.c.l.b16 %v81
  %v644 = vunpack.c.l.b16 %v82
  %v645 = vunpack.c.l.b16 %v83
  %v646 = vunpack.c.l.b16 %v84
  %v647 = vunpack.c.l.b16 %v85
  %v648 = vunpack.c.l.b16 %v86
  %v649 = vunpack.c.l.b16 %v87
  %v650 = vunpack.c.l.b16 %v88
  %v651 = vunpack.c.l.b16 %v89
  %v652 = vunpack.c.l.b16 %v90
  %v653 = vunpack.c.l.b16 %v91
  %v654 = vunpack.c.l.b16 %v92
  %v655 = vunpack.c.l.b16 %v93
  %v656 = vunpack.c.l.b16 %v94
  %v657 = vunpack.c.l.b16 %v95
  %v658 = vunpack.c.l.b16 %v96
  %v659 = vunpack.c.l.b16 %v97
  %v660 = vunpack.c.l.b16 %v98
  %v661 = vunpack.c.l.b16 %v99
  %v662 = vunpack.c.l.b16 %v100
  %v663 = vunpack.c.l.b16 %v101
  %v664 = vunpack.c.l.b16 %v102
  %v665 = vunpack.c.l.b16 %v103
  %v666 = vunpack.c.l.b16 %v104
  %v667 = vunpack.c.l.b16 %v105
  %v668 = vunpack.c.l.b16 %v106
  %v669 = vunpack.c.l.b16 %v107
  %v670 = vunpack.c.l.b16 %v108
  %v671 = vunpack.c.l.b16 %v109
  %v672 = vunpack.c.l.b16 %v110
  %v673 = vunpack.c.l.b16 %v111
  %v674 = vunpack.c.l.b16 %v112
  %v675 = vunpack.c.l.b16 %v113
  %v676 = vunpack.c.l.b16 %v114
  %v677 = vunpack.c.l.b16 %v115
  %v678 = vunpack.c.l.b16 %v116
  %v679 = vunpack.c.l.b16 %v117
  %v680 = vunpack.c.l.b16 %v118
  %v681 = vunpack.c.l.b16 %v119
  %v682 = vunpack.c.l.b16 %v120
  %v683 = vunpack.c.l.b16 %v121
  %v684 = vunpack.c.l.b16 %v122
  %v685 = vunpack.c.l.b16 %v123
  %v686 = vunpack.c.l.b16 %v124
  %v687 = vunpack.c.l.b16 %v125
  %v688 = vunpack.c.l.b16 %v126
  %v689 = vunpack.c.l.b16 %v127
  %v690 = vunpack.c.l.b16 %v128
  %v691 = vunpack.c.l.b16 %v129
  %v692 = vunpack.c.l.b16 %v130
  %v693 = vunpack.c.l.b16 %v131
  %v694 = vunpack.c.l.b16 %v132
  %v695 = vunpack.c.l.b16 %v133
  %v696 = vunpack.c.l.b16 %v134
  %v697 = vunpack.c.l.b16 %v135
  %v698 = vunpack.c.l.b16 %v136
  %v699 = vunpack.c.l.b16 %v137
  %v700 = vunpack.c.l.b16 %v138
  %v701 = vunpack.c.l.b16 %v139
  %v702 = vunpack.c.l.b16 %v140
  %v703 = vpack.c.b16 %v640, %v639
  %v704 = vpack.c.b16 %v642, %v641
  %v705 = vpack.c.b16 %v644, %v643
  %v706 = vpack.c.b16 %v646, %v645
  %v707 = vpack.c.b16 %v648, %v647
  %v708 = vpack.c.b16 %v650, %v649
  %v709 = vpack.c.b16 %v652, %v651
  %v710 = vpack.c.b16 %v654, %v653
  %v711 = vpack.c.b16 %v656, %v655
  %v712 = vpack.c.b16 %v658, %v657
  %v713 = vpack.c.b16 %v660, %v659
  %v714 = vpack.c.b16 %v662, %v661
  %v715 = vpack.c.b16 %v664, %v663
  %v716 = vpack.c.b16 %v666, %v665
  %v717 = vpack.c.b16 %v668, %v667
  %v718 = vpack.c.b16 %v670, %v669
  %v719 = vpack.c.b16 %v672, %v671
  %v720 = vpack.c.b16 %v674, %v673
  %v721 = vpack.c.b16 %v676, %v675
  %v722 = vpack.c.b16 %v678, %v677
  %v723 = vpack.c.b16 %v680, %v679
  %v724 = vpack.c.b16 %v682, %v681
  %v725 = vpack.c.b16 %v684, %v683
  %v726 = vpack.c.b16 %v686, %v685
  %v727 = vpack.c.b16 %v688, %v687
  %v728 = vpack.c.b16 %v690, %v689
  %v729 = vpack.c.b16 %v692, %v691
  %v730 = vpack.c.b16 %v694, %v693
  %v731 = vpack.c.b16 %v696, %v695
  %v732 = vpack.c.b16 %v698, %v697
  %v733 = vpack.c.b16 %v700, %v699
  %v734 = vpack.c.b16 %v702, %v701
  %v736 = vsel %vm305, %v703, 0
  %v739 = vsel %vm305, %v704, 0
  %v742 = vsel %vm305, %v705, 0
  %v745 = vsel %vm305, %v706, 0
  %v748 = vsel %vm305, %v707, 0
  %v751 = vsel %vm305, %v708, 0
  %v754 = vsel %vm305, %v709, 0
  %v757 = vsel %vm305, %v710, 0
  %v760 = vsel %vm305, %v711, 0
  %v763 = vsel %vm305, %v712, 0
  %v766 = vsel %vm305, %v713, 0
  %v769 = vsel %vm305, %v714, 0
  %v772 = vsel %vm305, %v715, 0
  %v775 = vsel %vm305, %v716, 0
  %v778 = vsel %vm305, %v717, 0
  %v781 = vsel %vm305, %v718, 0
  %v784 = vsel %vm305, %v719, 0
  %v787 = vsel %vm305, %v720, 0
  %v790 = vsel %vm305, %v721, 0
  %v793 = vsel %vm305, %v722, 0
  %v796 = vsel %vm305, %v723, 0
  %v799 = vsel %vm305, %v724, 0
  %v802 = vsel %vm305, %v725, 0
  %v805 = vsel %vm305, %v726, 0
  %v808 = vsel %vm305, %v727, 0
  %v811 = vsel %vm305, %v728, 0
  %v814 = vsel %vm305, %v729, 0
  %v817 = vsel %vm305, %v730, 0
  %v820 = vsel %vm305, %v731, 0
  %v823 = vsel %vm305, %v732, 0
  %v826 = vsel %vm305, %v733, 0
  %v829 = vsel %vm305, %v734, 0
  %831 = vmatpush.bf16.msra.mxu0 0
  %832 = vmatpush.bf16.msra.mxu0 0
  %833 = vmatpush.bf16.msra.mxu0 0
  %834 = vmatpush.bf16.msra.mxu0 0
  %835 = vmatpush.bf16.msra.mxu0 0
  %836 = vmatpush.bf16.msra.mxu0 0
  %837 = vmatpush.bf16.msra.mxu0 0
  %838 = vmatpush.bf16.msra.mxu0 %v404
  %839 = vmatmul.bf16.gmra.mxu0 %v736
  %v840 = vpop.f32.mrf.mxu0
  %v841 = vadd.f32 %v416, %v840
  %v842 = vpop.f32.mrf.mxu0
  %v843 = vadd.f32 %v418, %v842
  %844 = vmatmul.bf16.gmra.mxu0 %v739
  %v845 = vpop.f32.mrf.mxu0
  %v846 = vadd.f32 %v421, %v845
  %v847 = vpop.f32.mrf.mxu0
  %v848 = vadd.f32 %v423, %v847
  %849 = vmatmul.bf16.gmra.mxu0 %v742
  %v850 = vpop.f32.mrf.mxu0
  %v851 = vadd.f32 %v426, %v850
  %v852 = vpop.f32.mrf.mxu0
  %v853 = vadd.f32 %v428, %v852
  %854 = vmatmul.bf16.gmra.mxu0 %v745
  %v855 = vpop.f32.mrf.mxu0
  %v856 = vadd.f32 %v431, %v855
  %v857 = vpop.f32.mrf.mxu0
  %v858 = vadd.f32 %v433, %v857
  %859 = vmatmul.bf16.gmra.mxu0 %v748
  %v860 = vpop.f32.mrf.mxu0
  %v861 = vadd.f32 %v436, %v860
  %v862 = vpop.f32.mrf.mxu0
  %v863 = vadd.f32 %v438, %v862
  %864 = vmatmul.bf16.gmra.mxu0 %v751
  %v865 = vpop.f32.mrf.mxu0
  %v866 = vadd.f32 %v441, %v865
  %v867 = vpop.f32.mrf.mxu0
  %v868 = vadd.f32 %v443, %v867
  %869 = vmatmul.bf16.gmra.mxu0 %v754
  %v870 = vpop.f32.mrf.mxu0
  %v871 = vadd.f32 %v446, %v870
  %v872 = vpop.f32.mrf.mxu0
  %v873 = vadd.f32 %v448, %v872
  %874 = vmatmul.bf16.gmra.mxu0 %v757
  %v875 = vpop.f32.mrf.mxu0
  %v876 = vadd.f32 %v451, %v875
  %v877 = vpop.f32.mrf.mxu0
  %v878 = vadd.f32 %v453, %v877
  %879 = vmatmul.bf16.gmra.mxu0 %v760
  %v880 = vpop.f32.mrf.mxu0
  %v881 = vadd.f32 %v456, %v880
  %v882 = vpop.f32.mrf.mxu0
  %v883 = vadd.f32 %v458, %v882
  %884 = vmatmul.bf16.gmra.mxu0 %v763
  %v885 = vpop.f32.mrf.mxu0
  %v886 = vadd.f32 %v461, %v885
  %v887 = vpop.f32.mrf.mxu0
  %v888 = vadd.f32 %v463, %v887
  %889 = vmatmul.bf16.gmra.mxu0 %v766
  %v890 = vpop.f32.mrf.mxu0
  %v891 = vadd.f32 %v466, %v890
  %v892 = vpop.f32.mrf.mxu0
  %v893 = vadd.f32 %v468, %v892
  %894 = vmatmul.bf16.gmra.mxu0 %v769
  %v895 = vpop.f32.mrf.mxu0
  %v896 = vadd.f32 %v471, %v895
  %v897 = vpop.f32.mrf.mxu0
  %v898 = vadd.f32 %v473, %v897
  %899 = vmatmul.bf16.gmra.mxu0 %v772
  %v900 = vpop.f32.mrf.mxu0
  %v901 = vadd.f32 %v476, %v900
  %v902 = vpop.f32.mrf.mxu0
  %v903 = vadd.f32 %v478, %v902
  %904 = vmatmul.bf16.gmra.mxu0 %v775
  %v905 = vpop.f32.mrf.mxu0
  %v906 = vadd.f32 %v481, %v905
  %v907 = vpop.f32.mrf.mxu0
  %v908 = vadd.f32 %v483, %v907
  %909 = vmatmul.bf16.gmra.mxu0 %v778
  %v910 = vpop.f32.mrf.mxu0
  %v911 = vadd.f32 %v486, %v910
  %v912 = vpop.f32.mrf.mxu0
  %v913 = vadd.f32 %v488, %v912
  %914 = vmatmul.bf16.gmra.mxu0 %v781
  %v915 = vpop.f32.mrf.mxu0
  %v916 = vadd.f32 %v491, %v915
  %v917 = vpop.f32.mrf.mxu0
  %v918 = vadd.f32 %v493, %v917
  %919 = vmatmul.bf16.gmra.mxu0 %v784
  %v920 = vpop.f32.mrf.mxu0
  %v921 = vadd.f32 %v496, %v920
  %v922 = vpop.f32.mrf.mxu0
  %v923 = vadd.f32 %v498, %v922
  %924 = vmatmul.bf16.gmra.mxu0 %v787
  %v925 = vpop.f32.mrf.mxu0
  %v926 = vadd.f32 %v501, %v925
  %v927 = vpop.f32.mrf.mxu0
  %v928 = vadd.f32 %v503, %v927
  %929 = vmatmul.bf16.gmra.mxu0 %v790
  %v930 = vpop.f32.mrf.mxu0
  %v931 = vadd.f32 %v506, %v930
  %v932 = vpop.f32.mrf.mxu0
  %v933 = vadd.f32 %v508, %v932
  %934 = vmatmul.bf16.gmra.mxu0 %v793
  %v935 = vpop.f32.mrf.mxu0
  %v936 = vadd.f32 %v511, %v935
  %v937 = vpop.f32.mrf.mxu0
  %v938 = vadd.f32 %v513, %v937
  %939 = vmatmul.bf16.gmra.mxu0 %v796
  %v940 = vpop.f32.mrf.mxu0
  %v941 = vadd.f32 %v516, %v940
  %v942 = vpop.f32.mrf.mxu0
  %v943 = vadd.f32 %v518, %v942
  %944 = vmatmul.bf16.gmra.mxu0 %v799
  %v945 = vpop.f32.mrf.mxu0
  %v946 = vadd.f32 %v521, %v945
  %v947 = vpop.f32.mrf.mxu0
  %v948 = vadd.f32 %v523, %v947
  %949 = vmatmul.bf16.gmra.mxu0 %v802
  %v950 = vpop.f32.mrf.mxu0
  %v951 = vadd.f32 %v526, %v950
  %v952 = vpop.f32.mrf.mxu0
  %v953 = vadd.f32 %v528, %v952
  %954 = vmatmul.bf16.gmra.mxu0 %v805
  %v955 = vpop.f32.mrf.mxu0
  %v956 = vadd.f32 %v531, %v955
  %v957 = vpop.f32.mrf.mxu0
  %v958 = vadd.f32 %v533, %v957
  %959 = vmatmul.bf16.gmra.mxu0 %v808
  %v960 = vpop.f32.mrf.mxu0
  %v961 = vadd.f32 %v536, %v960
  %v962 = vpop.f32.mrf.mxu0
  %v963 = vadd.f32 %v538, %v962
  %964 = vmatmul.bf16.gmra.mxu0 %v811
  %v965 = vpop.f32.mrf.mxu0
  %v966 = vadd.f32 %v541, %v965
  %v967 = vpop.f32.mrf.mxu0
  %v968 = vadd.f32 %v543, %v967
  %969 = vmatmul.bf16.gmra.mxu0 %v814
  %v970 = vpop.f32.mrf.mxu0
  %v971 = vadd.f32 %v546, %v970
  %v972 = vpop.f32.mrf.mxu0
  %v973 = vadd.f32 %v548, %v972
  %974 = vmatmul.bf16.gmra.mxu0 %v817
  %v975 = vpop.f32.mrf.mxu0
  %v976 = vadd.f32 %v551, %v975
  %v977 = vpop.f32.mrf.mxu0
  %v978 = vadd.f32 %v553, %v977
  %979 = vmatmul.bf16.gmra.mxu0 %v820
  %v980 = vpop.f32.mrf.mxu0
  %v981 = vadd.f32 %v556, %v980
  %v982 = vpop.f32.mrf.mxu0
  %v983 = vadd.f32 %v558, %v982
  %984 = vmatmul.bf16.gmra.mxu0 %v823
  %v985 = vpop.f32.mrf.mxu0
  %v986 = vadd.f32 %v561, %v985
  %v987 = vpop.f32.mrf.mxu0
  %v988 = vadd.f32 %v563, %v987
  %989 = vmatmul.bf16.gmra.mxu0 %v826
  %v990 = vpop.f32.mrf.mxu0
  %v991 = vadd.f32 %v566, %v990
  %v992 = vpop.f32.mrf.mxu0
  %v993 = vadd.f32 %v568, %v992
  %994 = vmatmul.bf16.gmra.mxu0 %v829
  %v995 = vpop.f32.mrf.mxu0
  %v996 = vadd.f32 %v571, %v995
  %v997 = vpop.f32.mrf.mxu0
  %v998 = vadd.f32 %v573, %v997
  %999 = vdwg.mxu0
  %v1001 = vsel %vm402, %v304, 0
  %1003 = vmatpush.bf16.msra.mxu0 0
  %1004 = vmatpush.bf16.msra.mxu0 0
  %1005 = vmatpush.bf16.msra.mxu0 0
  %1006 = vmatpush.bf16.msra.mxu0 0
  %1007 = vmatpush.bf16.msra.mxu0 0
  %1008 = vmatpush.bf16.msra.mxu0 0
  %1009 = vmatpush.bf16.msra.mxu0 0
  %1010 = vmatpush.bf16.msra.mxu0 %v1001
  %1011 = vmatmul.bf16.gmra.mxu0 %v736
  %v1012 = vpop.f32.mrf.mxu0
  %v1013 = vadd.f32 0.0, %v1012
  %v1014 = vpop.f32.mrf.mxu0
  %v1015 = vadd.f32 0.0, %v1014
  %1016 = vmatmul.bf16.gmra.mxu0 %v739
  %v1017 = vpop.f32.mrf.mxu0
  %v1018 = vadd.f32 0.0, %v1017
  %v1019 = vpop.f32.mrf.mxu0
  %v1020 = vadd.f32 0.0, %v1019
  %1021 = vmatmul.bf16.gmra.mxu0 %v742
  %v1022 = vpop.f32.mrf.mxu0
  %v1023 = vadd.f32 0.0, %v1022
  %v1024 = vpop.f32.mrf.mxu0
  %v1025 = vadd.f32 0.0, %v1024
  %1026 = vmatmul.bf16.gmra.mxu0 %v745
  %v1027 = vpop.f32.mrf.mxu0
  %v1028 = vadd.f32 0.0, %v1027
  %v1029 = vpop.f32.mrf.mxu0
  %v1030 = vadd.f32 0.0, %v1029
  %1031 = vmatmul.bf16.gmra.mxu0 %v748
  %v1032 = vpop.f32.mrf.mxu0
  %v1033 = vadd.f32 0.0, %v1032
  %v1034 = vpop.f32.mrf.mxu0
  %v1035 = vadd.f32 0.0, %v1034
  %1036 = vmatmul.bf16.gmra.mxu0 %v751
  %v1037 = vpop.f32.mrf.mxu0
  %v1038 = vadd.f32 0.0, %v1037
  %v1039 = vpop.f32.mrf.mxu0
  %v1040 = vadd.f32 0.0, %v1039
  %1041 = vmatmul.bf16.gmra.mxu0 %v754
  %v1042 = vpop.f32.mrf.mxu0
  %v1043 = vadd.f32 0.0, %v1042
  %v1044 = vpop.f32.mrf.mxu0
  %v1045 = vadd.f32 0.0, %v1044
  %1046 = vmatmul.bf16.gmra.mxu0 %v757
  %v1047 = vpop.f32.mrf.mxu0
  %v1048 = vadd.f32 0.0, %v1047
  %v1049 = vpop.f32.mrf.mxu0
  %v1050 = vadd.f32 0.0, %v1049
  %1051 = vmatmul.bf16.gmra.mxu0 %v760
  %v1052 = vpop.f32.mrf.mxu0
  %v1053 = vadd.f32 0.0, %v1052
  %v1054 = vpop.f32.mrf.mxu0
  %v1055 = vadd.f32 0.0, %v1054
  %1056 = vmatmul.bf16.gmra.mxu0 %v763
  %v1057 = vpop.f32.mrf.mxu0
  %v1058 = vadd.f32 0.0, %v1057
  %v1059 = vpop.f32.mrf.mxu0
  %v1060 = vadd.f32 0.0, %v1059
  %1061 = vmatmul.bf16.gmra.mxu0 %v766
  %v1062 = vpop.f32.mrf.mxu0
  %v1063 = vadd.f32 0.0, %v1062
  %v1064 = vpop.f32.mrf.mxu0
  %v1065 = vadd.f32 0.0, %v1064
  %1066 = vmatmul.bf16.gmra.mxu0 %v769
  %v1067 = vpop.f32.mrf.mxu0
  %v1068 = vadd.f32 0.0, %v1067
  %v1069 = vpop.f32.mrf.mxu0
  %v1070 = vadd.f32 0.0, %v1069
  %1071 = vmatmul.bf16.gmra.mxu0 %v772
  %v1072 = vpop.f32.mrf.mxu0
  %v1073 = vadd.f32 0.0, %v1072
  %v1074 = vpop.f32.mrf.mxu0
  %v1075 = vadd.f32 0.0, %v1074
  %1076 = vmatmul.bf16.gmra.mxu0 %v775
  %v1077 = vpop.f32.mrf.mxu0
  %v1078 = vadd.f32 0.0, %v1077
  %v1079 = vpop.f32.mrf.mxu0
  %v1080 = vadd.f32 0.0, %v1079
  %1081 = vmatmul.bf16.gmra.mxu0 %v778
  %v1082 = vpop.f32.mrf.mxu0
  %v1083 = vadd.f32 0.0, %v1082
  %v1084 = vpop.f32.mrf.mxu0
  %v1085 = vadd.f32 0.0, %v1084
  %1086 = vmatmul.bf16.gmra.mxu0 %v781
  %v1087 = vpop.f32.mrf.mxu0
  %v1088 = vadd.f32 0.0, %v1087
  %v1089 = vpop.f32.mrf.mxu0
  %v1090 = vadd.f32 0.0, %v1089
  %1091 = vmatmul.bf16.gmra.mxu0 %v784
  %v1092 = vpop.f32.mrf.mxu0
  %v1093 = vadd.f32 0.0, %v1092
  %v1094 = vpop.f32.mrf.mxu0
  %v1095 = vadd.f32 0.0, %v1094
  %1096 = vmatmul.bf16.gmra.mxu0 %v787
  %v1097 = vpop.f32.mrf.mxu0
  %v1098 = vadd.f32 0.0, %v1097
  %v1099 = vpop.f32.mrf.mxu0
  %v1100 = vadd.f32 0.0, %v1099
  %1101 = vmatmul.bf16.gmra.mxu0 %v790
  %v1102 = vpop.f32.mrf.mxu0
  %v1103 = vadd.f32 0.0, %v1102
  %v1104 = vpop.f32.mrf.mxu0
  %v1105 = vadd.f32 0.0, %v1104
  %1106 = vmatmul.bf16.gmra.mxu0 %v793
  %v1107 = vpop.f32.mrf.mxu0
  %v1108 = vadd.f32 0.0, %v1107
  %v1109 = vpop.f32.mrf.mxu0
  %v1110 = vadd.f32 0.0, %v1109
  %1111 = vmatmul.bf16.gmra.mxu0 %v796
  %v1112 = vpop.f32.mrf.mxu0
  %v1113 = vadd.f32 0.0, %v1112
  %v1114 = vpop.f32.mrf.mxu0
  %v1115 = vadd.f32 0.0, %v1114
  %1116 = vmatmul.bf16.gmra.mxu0 %v799
  %v1117 = vpop.f32.mrf.mxu0
  %v1118 = vadd.f32 0.0, %v1117
  %v1119 = vpop.f32.mrf.mxu0
  %v1120 = vadd.f32 0.0, %v1119
  %1121 = vmatmul.bf16.gmra.mxu0 %v802
  %v1122 = vpop.f32.mrf.mxu0
  %v1123 = vadd.f32 0.0, %v1122
  %v1124 = vpop.f32.mrf.mxu0
  %v1125 = vadd.f32 0.0, %v1124
  %1126 = vmatmul.bf16.gmra.mxu0 %v805
  %v1127 = vpop.f32.mrf.mxu0
  %v1128 = vadd.f32 0.0, %v1127
  %v1129 = vpop.f32.mrf.mxu0
  %v1130 = vadd.f32 0.0, %v1129
  %1131 = vmatmul.bf16.gmra.mxu0 %v808
  %v1132 = vpop.f32.mrf.mxu0
  %v1133 = vadd.f32 0.0, %v1132
  %v1134 = vpop.f32.mrf.mxu0
  %v1135 = vadd.f32 0.0, %v1134
  %1136 = vmatmul.bf16.gmra.mxu0 %v811
  %v1137 = vpop.f32.mrf.mxu0
  %v1138 = vadd.f32 0.0, %v1137
  %v1139 = vpop.f32.mrf.mxu0
  %v1140 = vadd.f32 0.0, %v1139
  %1141 = vmatmul.bf16.gmra.mxu0 %v814
  %v1142 = vpop.f32.mrf.mxu0
  %v1143 = vadd.f32 0.0, %v1142
  %v1144 = vpop.f32.mrf.mxu0
  %v1145 = vadd.f32 0.0, %v1144
  %1146 = vmatmul.bf16.gmra.mxu0 %v817
  %v1147 = vpop.f32.mrf.mxu0
  %v1148 = vadd.f32 0.0, %v1147
  %v1149 = vpop.f32.mrf.mxu0
  %v1150 = vadd.f32 0.0, %v1149
  %1151 = vmatmul.bf16.gmra.mxu0 %v820
  %v1152 = vpop.f32.mrf.mxu0
  %v1153 = vadd.f32 0.0, %v1152
  %v1154 = vpop.f32.mrf.mxu0
  %v1155 = vadd.f32 0.0, %v1154
  %1156 = vmatmul.bf16.gmra.mxu0 %v823
  %v1157 = vpop.f32.mrf.mxu0
  %v1158 = vadd.f32 0.0, %v1157
  %v1159 = vpop.f32.mrf.mxu0
  %v1160 = vadd.f32 0.0, %v1159
  %1161 = vmatmul.bf16.gmra.mxu0 %v826
  %v1162 = vpop.f32.mrf.mxu0
  %v1163 = vadd.f32 0.0, %v1162
  %v1164 = vpop.f32.mrf.mxu0
  %v1165 = vadd.f32 0.0, %v1164
  %1166 = vmatmul.bf16.gmra.mxu0 %v829
  %v1167 = vpop.f32.mrf.mxu0
  %v1168 = vadd.f32 0.0, %v1167
  %v1169 = vpop.f32.mrf.mxu0
  %v1170 = vadd.f32 0.0, %v1169
  %1171 = vdwg.mxu0
  %v1172 = vadd.f32 %v841, %v1013
  %v1173 = vadd.f32 %v843, %v1015
  %v1174 = vadd.f32 %v846, %v1018
  %v1175 = vadd.f32 %v848, %v1020
  %v1176 = vadd.f32 %v851, %v1023
  %v1177 = vadd.f32 %v853, %v1025
  %v1178 = vadd.f32 %v856, %v1028
  %v1179 = vadd.f32 %v858, %v1030
  %v1180 = vadd.f32 %v861, %v1033
  %v1181 = vadd.f32 %v863, %v1035
  %v1182 = vadd.f32 %v866, %v1038
  %v1183 = vadd.f32 %v868, %v1040
  %v1184 = vadd.f32 %v871, %v1043
  %v1185 = vadd.f32 %v873, %v1045
  %v1186 = vadd.f32 %v876, %v1048
  %v1187 = vadd.f32 %v878, %v1050
  %v1188 = vadd.f32 %v881, %v1053
  %v1189 = vadd.f32 %v883, %v1055
  %v1190 = vadd.f32 %v886, %v1058
  %v1191 = vadd.f32 %v888, %v1060
  %v1192 = vadd.f32 %v891, %v1063
  %v1193 = vadd.f32 %v893, %v1065
  %v1194 = vadd.f32 %v896, %v1068
  %v1195 = vadd.f32 %v898, %v1070
  %v1196 = vadd.f32 %v901, %v1073
  %v1197 = vadd.f32 %v903, %v1075
  %v1198 = vadd.f32 %v906, %v1078
  %v1199 = vadd.f32 %v908, %v1080
  %v1200 = vadd.f32 %v911, %v1083
  %v1201 = vadd.f32 %v913, %v1085
  %v1202 = vadd.f32 %v916, %v1088
  %v1203 = vadd.f32 %v918, %v1090
  %v1204 = vadd.f32 %v921, %v1093
  %v1205 = vadd.f32 %v923, %v1095
  %v1206 = vadd.f32 %v926, %v1098
  %v1207 = vadd.f32 %v928, %v1100
  %v1208 = vadd.f32 %v931, %v1103
  %v1209 = vadd.f32 %v933, %v1105
  %v1210 = vadd.f32 %v936, %v1108
  %v1211 = vadd.f32 %v938, %v1110
  %v1212 = vadd.f32 %v941, %v1113
  %v1213 = vadd.f32 %v943, %v1115
  %v1214 = vadd.f32 %v946, %v1118
  %v1215 = vadd.f32 %v948, %v1120
  %v1216 = vadd.f32 %v951, %v1123
  %v1217 = vadd.f32 %v953, %v1125
  %v1218 = vadd.f32 %v956, %v1128
  %v1219 = vadd.f32 %v958, %v1130
  %v1220 = vadd.f32 %v961, %v1133
  %v1221 = vadd.f32 %v963, %v1135
  %v1222 = vadd.f32 %v966, %v1138
  %v1223 = vadd.f32 %v968, %v1140
  %v1224 = vadd.f32 %v971, %v1143
  %v1225 = vadd.f32 %v973, %v1145
  %v1226 = vadd.f32 %v976, %v1148
  %v1227 = vadd.f32 %v978, %v1150
  %v1228 = vadd.f32 %v981, %v1153
  %v1229 = vadd.f32 %v983, %v1155
  %v1230 = vadd.f32 %v986, %v1158
  %v1231 = vadd.f32 %v988, %v1160
  %v1232 = vadd.f32 %v991, %v1163
  %v1233 = vadd.f32 %v993, %v1165
  %v1234 = vadd.f32 %v996, %v1168
  %v1235 = vadd.f32 %v998, %v1170
  %vm1236 = vcmask 97280
  %1237 = vst.msk [vmem:[%s2] sm:$0xff] %vm1236, %v1172
  %1238 = vst.msk [vmem:[%s2 + $0x8] sm:$0xff] %vm1236, %v1173
  %1239 = vst.msk [vmem:[%s2 + $0x10] sm:$0xff] %vm1236, %v1174
  %1240 = vst.msk [vmem:[%s2 + $0x18] sm:$0xff] %vm1236, %v1175
  %1241 = vst.msk [vmem:[%s2 + $0x20] sm:$0xff] %vm1236, %v1176
  %1242 = vst.msk [vmem:[%s2 + $0x28] sm:$0xff] %vm1236, %v1177
  %1243 = vst.msk [vmem:[%s2 + $0x30] sm:$0xff] %vm1236, %v1178
  %1244 = vst.msk [vmem:[%s2 + $0x38] sm:$0xff] %vm1236, %v1179
  %1245 = vst.msk [vmem:[%s2 + $0x40] sm:$0xff] %vm1236, %v1180
  %1246 = vst.msk [vmem:[%s2 + $0x48] sm:$0xff] %vm1236, %v1181
  %1247 = vst.msk [vmem:[%s2 + $0x50] sm:$0xff] %vm1236, %v1182
  %1248 = vst.msk [vmem:[%s2 + $0x58] sm:$0xff] %vm1236, %v1183
  %1249 = vst.msk [vmem:[%s2 + $0x60] sm:$0xff] %vm1236, %v1184
  %1250 = vst.msk [vmem:[%s2 + $0x68] sm:$0xff] %vm1236, %v1185
  %1251 = vst.msk [vmem:[%s2 + $0x70] sm:$0xff] %vm1236, %v1186
  %1252 = vst.msk [vmem:[%s2 + $0x78] sm:$0xff] %vm1236, %v1187
  %1253 = vst.msk [vmem:[%s2 + $0x80] sm:$0xff] %vm1236, %v1188
  %1254 = vst.msk [vmem:[%s2 + $0x88] sm:$0xff] %vm1236, %v1189
  %1255 = vst.msk [vmem:[%s2 + $0x90] sm:$0xff] %vm1236, %v1190
  %1256 = vst.msk [vmem:[%s2 + $0x98] sm:$0xff] %vm1236, %v1191
  %1257 = vst.msk [vmem:[%s2 + $0xa0] sm:$0xff] %vm1236, %v1192
  %1258 = vst.msk [vmem:[%s2 + $0xa8] sm:$0xff] %vm1236, %v1193
  %1259 = vst.msk [vmem:[%s2 + $0xb0] sm:$0xff] %vm1236, %v1194
  %1260 = vst.msk [vmem:[%s2 + $0xb8] sm:$0xff] %vm1236, %v1195
  %1261 = vst.msk [vmem:[%s2 + $0xc0] sm:$0xff] %vm1236, %v1196
  %1262 = vst.msk [vmem:[%s2 + $0xc8] sm:$0xff] %vm1236, %v1197
  %1263 = vst.msk [vmem:[%s2 + $0xd0] sm:$0xff] %vm1236, %v1198
  %1264 = vst.msk [vmem:[%s2 + $0xd8] sm:$0xff] %vm1236, %v1199
  %1265 = vst.msk [vmem:[%s2 + $0xe0] sm:$0xff] %vm1236, %v1200
  %1266 = vst.msk [vmem:[%s2 + $0xe8] sm:$0xff] %vm1236, %v1201
  %1267 = vst.msk [vmem:[%s2 + $0xf0] sm:$0xff] %vm1236, %v1202
  %1268 = vst.msk [vmem:[%s2 + $0xf8] sm:$0xff] %vm1236, %v1203
  %1269 = vst.msk [vmem:[%s2 + $0x100] sm:$0xff] %vm1236, %v1204
  %1270 = vst.msk [vmem:[%s2 + $0x108] sm:$0xff] %vm1236, %v1205
  %1271 = vst.msk [vmem:[%s2 + $0x110] sm:$0xff] %vm1236, %v1206
  %1272 = vst.msk [vmem:[%s2 + $0x118] sm:$0xff] %vm1236, %v1207
  %1273 = vst.msk [vmem:[%s2 + $0x120] sm:$0xff] %vm1236, %v1208
  %1274 = vst.msk [vmem:[%s2 + $0x128] sm:$0xff] %vm1236, %v1209
  %1275 = vst.msk [vmem:[%s2 + $0x130] sm:$0xff] %vm1236, %v1210
  %1276 = vst.msk [vmem:[%s2 + $0x138] sm:$0xff] %vm1236, %v1211
  %1277 = vst.msk [vmem:[%s2 + $0x140] sm:$0xff] %vm1236, %v1212
  %1278 = vst.msk [vmem:[%s2 + $0x148] sm:$0xff] %vm1236, %v1213
  %1279 = vst.msk [vmem:[%s2 + $0x150] sm:$0xff] %vm1236, %v1214
  %1280 = vst.msk [vmem:[%s2 + $0x158] sm:$0xff] %vm1236, %v1215
  %1281 = vst.msk [vmem:[%s2 + $0x160] sm:$0xff] %vm1236, %v1216
  %1282 = vst.msk [vmem:[%s2 + $0x168] sm:$0xff] %vm1236, %v1217
  %1283 = vst.msk [vmem:[%s2 + $0x170] sm:$0xff] %vm1236, %v1218
  %1284 = vst.msk [vmem:[%s2 + $0x178] sm:$0xff] %vm1236, %v1219
  %1285 = vst.msk [vmem:[%s2 + $0x180] sm:$0xff] %vm1236, %v1220
  %1286 = vst.msk [vmem:[%s2 + $0x188] sm:$0xff] %vm1236, %v1221
  %1287 = vst.msk [vmem:[%s2 + $0x190] sm:$0xff] %vm1236, %v1222
  %1288 = vst.msk [vmem:[%s2 + $0x198] sm:$0xff] %vm1236, %v1223
  %1289 = vst.msk [vmem:[%s2 + $0x1a0] sm:$0xff] %vm1236, %v1224
  %1290 = vst.msk [vmem:[%s2 + $0x1a8] sm:$0xff] %vm1236, %v1225
  %1291 = vst.msk [vmem:[%s2 + $0x1b0] sm:$0xff] %vm1236, %v1226
  %1292 = vst.msk [vmem:[%s2 + $0x1b8] sm:$0xff] %vm1236, %v1227
  %1293 = vst.msk [vmem:[%s2 + $0x1c0] sm:$0xff] %vm1236, %v1228
  %1294 = vst.msk [vmem:[%s2 + $0x1c8] sm:$0xff] %vm1236, %v1229
  %1295 = vst.msk [vmem:[%s2 + $0x1d0] sm:$0xff] %vm1236, %v1230
  %1296 = vst.msk [vmem:[%s2 + $0x1d8] sm:$0xff] %vm1236, %v1231
  %1297 = vst.msk [vmem:[%s2 + $0x1e0] sm:$0xff] %vm1236, %v1232
  %1298 = vst.msk [vmem:[%s2 + $0x1e8] sm:$0xff] %vm1236, %v1233
  %1299 = vst.msk [vmem:[%s2 + $0x1f0] sm:$0xff] %vm1236, %v1234
  %1300 = vst.msk [vmem:[%s2 + $0x1f8] sm:$0xff] %vm1236, %v1235
  // Predicated region
  $region10: #{fourier_conv_forward.1} parent=0 // pred_check
    _
  $region11: #{fourier_conv_forward.1} parent=0 // pred_check_branch
    %1302 = sbr.rel (0) target = $region13
  $region12: #{fourier_conv_forward.1} parent=0 // pred_region
    _
  $region13: #{fourier_conv_forward.1} parent=0 // pred_fallthru
    _
  // Predicated region
  $region14: #{fourier_conv_forward.1} parent=0 // pred_check
    _
  $region15: #{fourier_conv_forward.1} parent=0 // pred_check_branch
    %1304 = sbr.rel (0) target = $region17
  $region16: #{fourier_conv_forward.1} parent=0 // pred_region
    _
  $region17: #{fourier_conv_forward.1} parent=0 // pred_fallthru
    _

</llo_original>
